<compile_context>
chip_gen: v7x
topology: tpu7x:2x2x1
jax: 0.10.0
libtpu: 0.0.40
codegen_flags: <defaults>
</compile_context>

<pallas_src>
import numpy as np
import jax
import jax.numpy as jnp
from jax.experimental import pallas as pl
from jax.experimental.pallas import tpu as pltpu


def _guan_fused_kernel(e_ref, x_ref, w1e_ref, w1s_ref, w1d_ref, b1_ref,
                       s_ref, d_ref, agg_ref, w2x_ref, w2a_ref, b2_ref,
                       e_out_ref, x_out_ref):
    """One grid step == one batch element. Everything except e/x/outputs has a
    constant index_map and stays resident in VMEM across grid steps."""
    e = e_ref[0]                                                        # (E, E_in)
    x = x_ref[0]                                                        # (N, X_in)

    # --- edge MLP:  relu(cat([e, x[src], x[dst]]) @ W1 + b1) ---
    # cat(...) @ W1 == e @ W1_e + S @ (x @ W1_s) + D @ (x @ W1_d), with S/D the
    # static per-batch one-hot gather operators of shape (E, N).
    # TODO(synk): x@W1_s / x@W1_d / x@W2_x have K<=5, N_out=8; they could run as
    # VPU broadcast-MACs to free MXU push/pop slots if these ever matter.
    xs = jnp.dot(x, w1s_ref[...], preferred_element_type=jnp.float32)  # (N, E_out)
    xd = jnp.dot(x, w1d_ref[...], preferred_element_type=jnp.float32)  # (N, E_out)
    z = jnp.dot(e, w1e_ref[...], preferred_element_type=jnp.float32)   # (E, E_out)
    z = z + jnp.dot(s_ref[...], xs, preferred_element_type=jnp.float32)
    z = z + jnp.dot(d_ref[...], xd, preferred_element_type=jnp.float32)
    new_e = jnp.maximum(z + b1_ref[...], 0.0)                          # (E, E_out)
    e_out_ref[0] = new_e.astype(e_out_ref.dtype)

    # --- node update, consuming new_e straight from vregs/VMEM (no HBM trip) ---
    # node_add * W2[x_in] == (agg @ new_e) @ (ones(E_out,1) @ W2[x_in]):
    # all MXU, no lane-width-1 intermediate, no cross-lane reduction.
    agg_e = jnp.dot(agg_ref[...], new_e, preferred_element_type=jnp.float32)  # (N, E_out)
    zx = jnp.dot(x, w2x_ref[...], preferred_element_type=jnp.float32)         # (N, X_out)
    zx = zx + jnp.dot(agg_e, w2a_ref[...], preferred_element_type=jnp.float32)
    x_out_ref[0] = jnp.maximum(zx + b2_ref[...], 0.0).astype(x_out_ref.dtype)


def build_graph_operators(edges, n_nodes, e_out_channels):
    """Fold the static graph into dense per-batch MXU operators.

    Returns src_op, dst_op of shape (E, N) and agg_op of shape (N, E); agg_op
    already contains 1/(deg_in * E_out), reproducing the per-node torch.mean
    over (incoming edges, channels). No kron / block-diagonal over the batch:
    the batch is handled by the Pallas grid.
    """
    E = len(edges)
    src = np.array([s for s, _ in edges], dtype=np.int64)
    dst = np.array([d for _, d in edges], dtype=np.int64)
    S = np.zeros((E, n_nodes), dtype=np.float32)
    S[np.arange(E), src] = 1.0
    D = np.zeros((E, n_nodes), dtype=np.float32)
    D[np.arange(E), dst] = 1.0
    deg = np.zeros((n_nodes,), dtype=np.float32)
    np.add.at(deg, dst, 1.0)
    A = np.zeros((n_nodes, E), dtype=np.float32)
    for i, d in enumerate(dst):
        A[d, i] = 1.0 / (deg[d] * e_out_channels)
    return jnp.asarray(S), jnp.asarray(D), jnp.asarray(A)


def guan_forward(x, e, W1, b1, W2, b2, src_op, dst_op, agg_op):
    """x: (B, N, X_in), e: (B, E, E_in) -> (new_x: (B, N, X_out), new_e: (B, E, E_out))."""
    B, N, X_in = x.shape
    _, E, E_in = e.shape
    E_out = W1.shape[1]
    X_out = W2.shape[1]

    # split ln1 / ln2 weights so no concatenated activations are ever built
    W1e = W1[:E_in, :]
    W1s = W1[E_in:E_in + X_in, :]
    W1d = W1[E_in + X_in:, :]
    W2x = W2[:X_in, :]
    W2a_full = jnp.broadcast_to(W2[X_in:X_in + 1, :], (E_out, X_out))  # ones @ W2[x_in]
    b1r = b1.reshape(1, E_out)
    b2r = b2.reshape(1, X_out)

    def per_batch(shape):                       # one block per grid step
        return pl.BlockSpec((1,) + shape, lambda b: (b, 0, 0))

    def resident(shape):                        # DMA'd once, reused every step
        return pl.BlockSpec(shape, lambda b: (0,) * len(shape))

    flops_per_batch = 2 * (E * E_in * E_out          # e @ W1e
                           + 2 * N * X_in * E_out    # x @ W1s, x @ W1d
                           + 2 * E * N * E_out       # S @ xs, D @ xd
                           + N * E * E_out           # agg @ new_e
                           + N * X_in * X_out        # x @ W2x
                           + N * E_out * X_out)      # agg_e @ W2a
    bytes_accessed = 4 * (B * (E * E_in + N * X_in + E * E_out + N * X_out)
                          + 3 * E * N
                          + (E_in + 2 * X_in) * E_out + E_out
                          + X_in * X_out + E_out * X_out + X_out)

    new_e_out, new_x_out = pl.pallas_call(
        _guan_fused_kernel,
        out_shape=(jax.ShapeDtypeStruct((B, E, E_out), jnp.float32),
                   jax.ShapeDtypeStruct((B, N, X_out), jnp.float32)),
        grid=(B,),
        in_specs=[
            per_batch((E, E_in)),       # e
            per_batch((N, X_in)),       # x
            resident((E_in, E_out)),    # W1e
            resident((X_in, E_out)),    # W1s
            resident((X_in, E_out)),    # W1d
            resident((1, E_out)),       # b1
            resident((E, N)),           # src_op
            resident((E, N)),           # dst_op
            resident((N, E)),           # agg_op
            resident((X_in, X_out)),    # W2x
            resident((E_out, X_out)),   # W2a_full
            resident((1, X_out)),       # b2
        ],
        out_specs=(per_batch((E, E_out)), per_batch((N, X_out))),
        compiler_params=pltpu.CompilerParams(
            dimension_semantics=("parallel",),
            vmem_limit_bytes=32 * 1024 * 1024,
        ),
        cost_estimate=pl.CostEstimate(
            flops=B * flops_per_batch,
            transcendentals=0,
            bytes_accessed=bytes_accessed,
        ),
    )(e, x, W1e, W1s, W1d, b1r, src_op, dst_op, agg_op, W2x, W2a_full, b2r)

    return new_x_out, new_e_out


if __name__ == "__main__":
    B, N = 2, 6
    X_IN, X_OUT = 4, 8
    E_IN, E_OUT = 5, 8

    # static graph (plays the role of `edges` / `edges_dict` in the module)
    edges = [(0, 1), (1, 2), (2, 3), (3, 4), (4, 5), (0, 3), (1, 4), (2, 5)]
    n_edges = len(edges)
    src_idx = jnp.array([s for s, _ in edges], dtype=jnp.int32)
    dst_idx = jnp.array([d for _, d in edges], dtype=jnp.int32)

    src_op, dst_op, agg_op = build_graph_operators(edges, N, E_OUT)

    # deterministic parameters (shapes from nn.Linear in __init__)
    key = jax.random.PRNGKey(0)
    k1, k2, k3, k4, k5, k6 = jax.random.split(key, 6)
    D_IN1 = E_IN + 2 * X_IN
    W1 = jax.random.normal(k1, (D_IN1, E_OUT), jnp.float32) * 0.1     # ln1 weight^T
    b1 = jax.random.normal(k2, (E_OUT,), jnp.float32) * 0.1
    W2 = jax.random.normal(k3, (X_IN + 1, X_OUT), jnp.float32) * 0.1  # ln2 weight^T
    b2 = jax.random.normal(k4, (X_OUT,), jnp.float32) * 0.1

    x = jax.random.normal(k5, (B, N, X_IN), jnp.float32)
    e = jax.random.normal(k6, (B, n_edges, E_IN), jnp.float32)

    new_x, new_e = guan_forward(x, e, W1, b1, W2, b2, src_op, dst_op, agg_op)
    jax.block_until_ready((new_x, new_e))

    # pure-JAX reference (mirrors the PyTorch forward semantics)
    ref_e_in = jnp.concatenate([e, x[:, src_idx, :], x[:, dst_idx, :]], axis=-1)
    ref_e = jnp.maximum(ref_e_in @ W1 + b1, 0.0)
    deg = np.zeros((N,), dtype=np.float32)
    for (_, d) in edges:
        deg[d] += 1.0
    agg_nn = np.zeros((N, n_edges), dtype=np.float32)
    for i, (_, d) in enumerate(edges):
        agg_nn[d, i] = 1.0 / (deg[d] * E_OUT)
    node_add = jnp.einsum("beo,ne->bn", ref_e, jnp.asarray(agg_nn))[..., None]
    ref_x = jnp.maximum(jnp.concatenate([x, node_add], axis=-1) @ W2 + b2, 0.0)

    assert new_e.shape == (B, n_edges, E_OUT) and new_x.shape == (B, N, X_OUT)
    assert jnp.allclose(new_e, ref_e, atol=1e-4, rtol=1e-4)
    assert jnp.allclose(new_x, ref_x, atol=1e-4, rtol=1e-4)
    print("KERNEL_OK")
</pallas_src>

<mosaic_0001>
module attributes {stable_mosaic.version = 11 : i64} {
  func.func @_guan_fused_kernel(%arg0: i32, %arg1: memref<1x8x5xf32, #tpu.memory_space<vmem>>, %arg2: memref<1x6x4xf32, #tpu.memory_space<vmem>>, %arg3: memref<5x8xf32, #tpu.memory_space<vmem>>, %arg4: memref<4x8xf32, #tpu.memory_space<vmem>>, %arg5: memref<4x8xf32, #tpu.memory_space<vmem>>, %arg6: memref<1x8xf32, #tpu.memory_space<vmem>>, %arg7: memref<8x6xf32, #tpu.memory_space<vmem>>, %arg8: memref<8x6xf32, #tpu.memory_space<vmem>>, %arg9: memref<6x8xf32, #tpu.memory_space<vmem>>, %arg10: memref<4x8xf32, #tpu.memory_space<vmem>>, %arg11: memref<8x8xf32, #tpu.memory_space<vmem>>, %arg12: memref<1x8xf32, #tpu.memory_space<vmem>>, %arg13: memref<1x8x8xf32, #tpu.memory_space<vmem>>, %arg14: memref<1x6x8xf32, #tpu.memory_space<vmem>>) attributes {dimension_semantics = [#tpu.dimension_semantics<parallel>], iteration_bounds = array<i64: 2>, scalar_prefetch = 0 : i64, scratch_operands = 0 : i64, tpu.core_type = #tpu.core_type<tc>, window_params = [{transform_indices = @transform_0, window_bounds = array<i64: 1, 8, 5>}, {transform_indices = @transform_1, window_bounds = array<i64: 1, 6, 4>}, {pipeline_mode = #tpu.pipeline_mode<synchronous>, transform_indices = @transform_2, window_bounds = array<i64: 5, 8>}, {pipeline_mode = #tpu.pipeline_mode<synchronous>, transform_indices = @transform_3, window_bounds = array<i64: 4, 8>}, {pipeline_mode = #tpu.pipeline_mode<synchronous>, transform_indices = @transform_4, window_bounds = array<i64: 4, 8>}, {pipeline_mode = #tpu.pipeline_mode<synchronous>, transform_indices = @transform_5, window_bounds = array<i64: 1, 8>}, {pipeline_mode = #tpu.pipeline_mode<synchronous>, transform_indices = @transform_6, window_bounds = array<i64: 8, 6>}, {pipeline_mode = #tpu.pipeline_mode<synchronous>, transform_indices = @transform_7, window_bounds = array<i64: 8, 6>}, {pipeline_mode = #tpu.pipeline_mode<synchronous>, transform_indices = @transform_8, window_bounds = array<i64: 6, 8>}, {pipeline_mode = #tpu.pipeline_mode<synchronous>, transform_indices = @transform_9, window_bounds = array<i64: 4, 8>}, {pipeline_mode = #tpu.pipeline_mode<synchronous>, transform_indices = @transform_10, window_bounds = array<i64: 8, 8>}, {pipeline_mode = #tpu.pipeline_mode<synchronous>, transform_indices = @transform_11, window_bounds = array<i64: 1, 8>}, {transform_indices = @transform_12, window_bounds = array<i64: 1, 8, 8>}, {transform_indices = @transform_13, window_bounds = array<i64: 1, 6, 8>}]} {
    %c0 = arith.constant 0 : index
    %c0_0 = arith.constant 0 : index
    %c0_1 = arith.constant 0 : index
    %0 = vector.load %arg1[%c0, %c0_0, %c0_1] : memref<1x8x5xf32, #tpu.memory_space<vmem>>, vector<1x8x5xf32>
    %1 = vector.shape_cast %0 : vector<1x8x5xf32> to vector<8x5xf32>
    %c0_2 = arith.constant 0 : index
    %c0_3 = arith.constant 0 : index
    %c0_4 = arith.constant 0 : index
    %2 = vector.load %arg2[%c0_2, %c0_3, %c0_4] : memref<1x6x4xf32, #tpu.memory_space<vmem>>, vector<1x6x4xf32>
    %3 = vector.shape_cast %2 : vector<1x6x4xf32> to vector<6x4xf32>
    %c0_5 = arith.constant 0 : index
    %c0_6 = arith.constant 0 : index
    %4 = vector.load %arg4[%c0_5, %c0_6] : memref<4x8xf32, #tpu.memory_space<vmem>>, vector<4x8xf32>
    %cst = arith.constant dense<0.000000e+00> : vector<6x8xf32>
    %5 = tpu.matmul %3, %4, %cst {dimension_numbers = #tpu.dot_dimension_numbers<[1], [0], [0], [1], [0, 0, 1, 1], [], []>} : vector<6x4xf32>, vector<4x8xf32>, vector<6x8xf32> -> vector<6x8xf32>
    %c0_7 = arith.constant 0 : index
    %c0_8 = arith.constant 0 : index
    %6 = vector.load %arg5[%c0_7, %c0_8] : memref<4x8xf32, #tpu.memory_space<vmem>>, vector<4x8xf32>
    %cst_9 = arith.constant dense<0.000000e+00> : vector<6x8xf32>
    %7 = tpu.matmul %3, %6, %cst_9 {dimension_numbers = #tpu.dot_dimension_numbers<[1], [0], [0], [1], [0, 0, 1, 1], [], []>} : vector<6x4xf32>, vector<4x8xf32>, vector<6x8xf32> -> vector<6x8xf32>
    %c0_10 = arith.constant 0 : index
    %c0_11 = arith.constant 0 : index
    %8 = vector.load %arg3[%c0_10, %c0_11] : memref<5x8xf32, #tpu.memory_space<vmem>>, vector<5x8xf32>
    %cst_12 = arith.constant dense<0.000000e+00> : vector<8x8xf32>
    %9 = tpu.matmul %1, %8, %cst_12 {dimension_numbers = #tpu.dot_dimension_numbers<[1], [0], [0], [1], [0, 0, 1, 1], [], []>} : vector<8x5xf32>, vector<5x8xf32>, vector<8x8xf32> -> vector<8x8xf32>
    %c0_13 = arith.constant 0 : index
    %c0_14 = arith.constant 0 : index
    %10 = vector.load %arg7[%c0_13, %c0_14] : memref<8x6xf32, #tpu.memory_space<vmem>>, vector<8x6xf32>
    %cst_15 = arith.constant dense<0.000000e+00> : vector<8x8xf32>
    %11 = tpu.matmul %10, %5, %cst_15 {dimension_numbers = #tpu.dot_dimension_numbers<[1], [0], [0], [1], [0, 0, 1, 1], [], []>} : vector<8x6xf32>, vector<6x8xf32>, vector<8x8xf32> -> vector<8x8xf32>
    %12 = arith.addf %9, %11 : vector<8x8xf32>
    %c0_16 = arith.constant 0 : index
    %c0_17 = arith.constant 0 : index
    %13 = vector.load %arg8[%c0_16, %c0_17] : memref<8x6xf32, #tpu.memory_space<vmem>>, vector<8x6xf32>
    %cst_18 = arith.constant dense<0.000000e+00> : vector<8x8xf32>
    %14 = tpu.matmul %13, %7, %cst_18 {dimension_numbers = #tpu.dot_dimension_numbers<[1], [0], [0], [1], [0, 0, 1, 1], [], []>} : vector<8x6xf32>, vector<6x8xf32>, vector<8x8xf32> -> vector<8x8xf32>
    %15 = arith.addf %12, %14 : vector<8x8xf32>
    %c0_19 = arith.constant 0 : index
    %c0_20 = arith.constant 0 : index
    %16 = vector.load %arg6[%c0_19, %c0_20] : memref<1x8xf32, #tpu.memory_space<vmem>>, vector<1x8xf32>
    %17 = vector.broadcast %16 : vector<1x8xf32> to vector<8x8xf32>
    %18 = arith.addf %15, %17 : vector<8x8xf32>
    %cst_21 = arith.constant 0.000000e+00 : f32
    %19 = vector.broadcast %cst_21 : f32 to vector<8x8xf32>
    %20 = arith.maximumf %18, %19 : vector<8x8xf32>
    %c0_22 = arith.constant 0 : index
    %c0_23 = arith.constant 0 : index
    %c0_24 = arith.constant 0 : index
    %21 = vector.load %arg13[%c0_22, %c0_23, %c0_24] : memref<1x8x8xf32, #tpu.memory_space<vmem>>, vector<1x8x8xf32>
    %22 = vector.shape_cast %21 : vector<1x8x8xf32> to vector<8x8xf32>
    %23 = vector.shape_cast %20 : vector<8x8xf32> to vector<1x8x8xf32>
    tpu.vector_store %arg13[%c0_22, %c0_23, %c0_24], %23 {strides = array<i32>} : memref<1x8x8xf32, #tpu.memory_space<vmem>>, vector<1x8x8xf32>,
    %c0_25 = arith.constant 0 : index
    %c0_26 = arith.constant 0 : index
    %24 = vector.load %arg9[%c0_25, %c0_26] : memref<6x8xf32, #tpu.memory_space<vmem>>, vector<6x8xf32>
    %cst_27 = arith.constant dense<0.000000e+00> : vector<6x8xf32>
    %25 = tpu.matmul %24, %20, %cst_27 {dimension_numbers = #tpu.dot_dimension_numbers<[1], [0], [0], [1], [0, 0, 1, 1], [], []>} : vector<6x8xf32>, vector<8x8xf32>, vector<6x8xf32> -> vector<6x8xf32>
    %c0_28 = arith.constant 0 : index
    %c0_29 = arith.constant 0 : index
    %26 = vector.load %arg10[%c0_28, %c0_29] : memref<4x8xf32, #tpu.memory_space<vmem>>, vector<4x8xf32>
    %cst_30 = arith.constant dense<0.000000e+00> : vector<6x8xf32>
    %27 = tpu.matmul %3, %26, %cst_30 {dimension_numbers = #tpu.dot_dimension_numbers<[1], [0], [0], [1], [0, 0, 1, 1], [], []>} : vector<6x4xf32>, vector<4x8xf32>, vector<6x8xf32> -> vector<6x8xf32>
    %c0_31 = arith.constant 0 : index
    %c0_32 = arith.constant 0 : index
    %28 = vector.load %arg11[%c0_31, %c0_32] : memref<8x8xf32, #tpu.memory_space<vmem>>, vector<8x8xf32>
    %cst_33 = arith.constant dense<0.000000e+00> : vector<6x8xf32>
    %29 = tpu.matmul %25, %28, %cst_33 {dimension_numbers = #tpu.dot_dimension_numbers<[1], [0], [0], [1], [0, 0, 1, 1], [], []>} : vector<6x8xf32>, vector<8x8xf32>, vector<6x8xf32> -> vector<6x8xf32>
    %30 = arith.addf %27, %29 : vector<6x8xf32>
    %c0_34 = arith.constant 0 : index
    %c0_35 = arith.constant 0 : index
    %31 = vector.load %arg12[%c0_34, %c0_35] : memref<1x8xf32, #tpu.memory_space<vmem>>, vector<1x8xf32>
    %32 = vector.broadcast %31 : vector<1x8xf32> to vector<6x8xf32>
    %33 = arith.addf %30, %32 : vector<6x8xf32>
    %cst_36 = arith.constant 0.000000e+00 : f32
    %34 = vector.broadcast %cst_36 : f32 to vector<6x8xf32>
    %35 = arith.maximumf %33, %34 : vector<6x8xf32>
    %c0_37 = arith.constant 0 : index
    %c0_38 = arith.constant 0 : index
    %c0_39 = arith.constant 0 : index
    %36 = vector.load %arg14[%c0_37, %c0_38, %c0_39] : memref<1x6x8xf32, #tpu.memory_space<vmem>>, vector<1x6x8xf32>
    %37 = vector.shape_cast %36 : vector<1x6x8xf32> to vector<6x8xf32>
    %38 = vector.shape_cast %35 : vector<6x8xf32> to vector<1x6x8xf32>
    tpu.vector_store %arg14[%c0_37, %c0_38, %c0_39], %38 {strides = array<i32>} : memref<1x6x8xf32, #tpu.memory_space<vmem>>, vector<1x6x8xf32>,
    return
  }
  func.func @transform_0(%arg0: i32) -> (i32, i32, i32) {
    %c0_i32 = arith.constant 0 : i32
    %c0_i32_0 = arith.constant 0 : i32
    %c0_i32_1 = arith.constant 0 : i32
    return %arg0, %c0_i32, %c0_i32_0 : i32, i32, i32
  }
  func.func @transform_1(%arg0: i32) -> (i32, i32, i32) {
    %c0_i32 = arith.constant 0 : i32
    %c0_i32_0 = arith.constant 0 : i32
    %c0_i32_1 = arith.constant 0 : i32
    return %arg0, %c0_i32, %c0_i32_0 : i32, i32, i32
  }
  func.func @transform_2(%arg0: i32) -> (i32, i32) {
    %c0_i32 = arith.constant 0 : i32
    %c0_i32_0 = arith.constant 0 : i32
    %c0_i32_1 = arith.constant 0 : i32
    return %c0_i32, %c0_i32_0 : i32, i32
  }
  func.func @transform_3(%arg0: i32) -> (i32, i32) {
    %c0_i32 = arith.constant 0 : i32
    %c0_i32_0 = arith.constant 0 : i32
    %c0_i32_1 = arith.constant 0 : i32
    return %c0_i32, %c0_i32_0 : i32, i32
  }
  func.func @transform_4(%arg0: i32) -> (i32, i32) {
    %c0_i32 = arith.constant 0 : i32
    %c0_i32_0 = arith.constant 0 : i32
    %c0_i32_1 = arith.constant 0 : i32
    return %c0_i32, %c0_i32_0 : i32, i32
  }
  func.func @transform_5(%arg0: i32) -> (i32, i32) {
    %c0_i32 = arith.constant 0 : i32
    %c0_i32_0 = arith.constant 0 : i32
    %c0_i32_1 = arith.constant 0 : i32
    return %c0_i32, %c0_i32_0 : i32, i32
  }
  func.func @transform_6(%arg0: i32) -> (i32, i32) {
    %c0_i32 = arith.constant 0 : i32
    %c0_i32_0 = arith.constant 0 : i32
    %c0_i32_1 = arith.constant 0 : i32
    return %c0_i32, %c0_i32_0 : i32, i32
  }
  func.func @transform_7(%arg0: i32) -> (i32, i32) {
    %c0_i32 = arith.constant 0 : i32
    %c0_i32_0 = arith.constant 0 : i32
    %c0_i32_1 = arith.constant 0 : i32
    return %c0_i32, %c0_i32_0 : i32, i32
  }
  func.func @transform_8(%arg0: i32) -> (i32, i32) {
    %c0_i32 = arith.constant 0 : i32
    %c0_i32_0 = arith.constant 0 : i32
    %c0_i32_1 = arith.constant 0 : i32
    return %c0_i32, %c0_i32_0 : i32, i32
  }
  func.func @transform_9(%arg0: i32) -> (i32, i32) {
    %c0_i32 = arith.constant 0 : i32
    %c0_i32_0 = arith.constant 0 : i32
    %c0_i32_1 = arith.constant 0 : i32
    return %c0_i32, %c0_i32_0 : i32, i32
  }
  func.func @transform_10(%arg0: i32) -> (i32, i32) {
    %c0_i32 = arith.constant 0 : i32
    %c0_i32_0 = arith.constant 0 : i32
    %c0_i32_1 = arith.constant 0 : i32
    return %c0_i32, %c0_i32_0 : i32, i32
  }
  func.func @transform_11(%arg0: i32) -> (i32, i32) {
    %c0_i32 = arith.constant 0 : i32
    %c0_i32_0 = arith.constant 0 : i32
    %c0_i32_1 = arith.constant 0 : i32
    return %c0_i32, %c0_i32_0 : i32, i32
  }
  func.func @transform_12(%arg0: i32) -> (i32, i32, i32) {
    %c0_i32 = arith.constant 0 : i32
    %c0_i32_0 = arith.constant 0 : i32
    %c0_i32_1 = arith.constant 0 : i32
    return %arg0, %c0_i32, %c0_i32_0 : i32, i32, i32
  }
  func.func @transform_13(%arg0: i32) -> (i32, i32, i32) {
    %c0_i32 = arith.constant 0 : i32
    %c0_i32_0 = arith.constant 0 : i32
    %c0_i32_1 = arith.constant 0 : i32
    return %arg0, %c0_i32, %c0_i32_0 : i32, i32, i32
  }
}

</mosaic_0001>

<llo_original>
// kernel: tpu_custom_call.1
$region0: #{tpu_custom_call.1}
  #allocation0 [shape = 'u32[]', space=smem, size = 0x4, offset = 0x4, fixed_abs, tag = 'smem constant byte address 0x4 - core index']
  #allocation1 [shape = 'u32[144,128]{1,0:T(1,128)}', space=vmem, size = 0x12000, scoped, tag = 'internal scratch']
  %s0 = inlined_call_operand.vmem [shape: f32[2,8,5], index: 0, kind: input, shape index: {}]
  %s1 = inlined_call_operand.vmem [shape: f32[2,6,4], index: 1, kind: input, shape index: {}]
  %s2 = inlined_call_operand.vmem [shape: f32[5,8], index: 2, kind: input, shape index: {}]
  %s3 = inlined_call_operand.vmem [shape: f32[4,8], index: 3, kind: input, shape index: {}]
  %s4 = inlined_call_operand.vmem [shape: f32[4,8], index: 4, kind: input, shape index: {}]
  %s5 = inlined_call_operand.vmem [shape: f32[1,8], index: 5, kind: input, shape index: {}]
  %s6 = inlined_call_operand.vmem [shape: f32[8,6], index: 6, kind: input, shape index: {}]
  %s7 = inlined_call_operand.vmem [shape: f32[8,6], index: 7, kind: input, shape index: {}]
  %s8 = inlined_call_operand.vmem [shape: f32[6,8], index: 8, kind: input, shape index: {}]
  %s9 = inlined_call_operand.vmem [shape: f32[4,8], index: 9, kind: input, shape index: {}]
  %s10 = inlined_call_operand.vmem [shape: f32[8,8], index: 10, kind: input, shape index: {}]
  %s11 = inlined_call_operand.vmem [shape: f32[1,8], index: 11, kind: input, shape index: {}]
  %s12 = inlined_call_operand.hbm [shape: f32[2,8,8], index: 12, kind: output, shape index: {0}]
  %s13 = inlined_call_operand.vmem [shape: f32[2,6,8], index: 13, kind: output, shape index: {1}]
  %14 = xla_tuple %s12, %s13
  %s15 = sld [smem:[#allocation0]]
  $region89: #{tpu_custom_call.1} parent=0
    _
  %s17 = ssub.s32 1, %s15
  %s18 = scalar_select 0, %s17, %s15
  $region1: #{tpu_custom_call.1} parent=0
    #allocation2 [shape = 'u8[8192]{0}', space=vmem, size = 0x2000, scoped, tag = 'output window, operand 0']
    #allocation3 [shape = 's32[2]{0}', space=sflag, size = 0x8, scoped, tag = 'scoped memory for tpu_custom_call.1']
    %19 = vsyncpa [#allocation3], 0
    %s20 = scalar_lea.sflag [#allocation3], 1
    %21 = vsyncpa %s20, 0
    loop: start=0, step=1, limit=4
    $region2: #{tpu_custom_call.1} parent=1 // loop_pre_header
      _
    $region3: #{tpu_custom_call.1} parent=1 // loop_header
      %s23 = sphi 0, %s27
      %p24 = scmp.ge.s32.totalorder %s23, 4
      %s33 = sphi 0, %s35
      %s36 = sphi 0, %s33
      %s37 = sphi 0, %s36
      %s53 = sphi 0, %s37
      %s59 = sphi 0, %s61
      %s62 = sphi 0, %s59
      %s63 = sphi 0, %s62
      %s79 = sphi 0, %s63
      %s83 = sphi 0, %s83
      %s85 = sphi 0, %s83
      %s86 = sphi 0, %s85
      %s100 = sphi 0, %s86
      %s104 = sphi 0, %s104
      %s106 = sphi 0, %s104
      %s107 = sphi 0, %s106
      %s121 = sphi 0, %s107
      %s125 = sphi 0, %s125
      %s127 = sphi 0, %s125
      %s128 = sphi 0, %s127
      %s142 = sphi 0, %s128
      %s146 = sphi 0, %s146
      %s148 = sphi 0, %s146
      %s149 = sphi 0, %s148
      %s163 = sphi 0, %s149
      %s167 = sphi 0, %s167
      %s169 = sphi 0, %s167
      %s170 = sphi 0, %s169
      %s184 = sphi 0, %s170
      %s188 = sphi 0, %s188
      %s190 = sphi 0, %s188
      %s191 = sphi 0, %s190
      %s205 = sphi 0, %s191
      %s209 = sphi 0, %s209
      %s211 = sphi 0, %s209
      %s212 = sphi 0, %s211
      %s226 = sphi 0, %s212
      %s230 = sphi 0, %s230
      %s232 = sphi 0, %s230
      %s233 = sphi 0, %s232
      %s247 = sphi 0, %s233
      %s251 = sphi 0, %s251
      %s253 = sphi 0, %s251
      %s254 = sphi 0, %s253
      %s268 = sphi 0, %s254
      %s272 = sphi 0, %s272
      %s274 = sphi 0, %s272
      %s275 = sphi 0, %s274
      %s289 = sphi 0, %s275
      %s295 = sphi 0, %s297
      %s298 = sphi 0, %s295
      %s299 = sphi 0, %s298
      %s315 = sphi 0, %s299
      %s321 = sphi 0, %s323
      %s324 = sphi 0, %s321
      %s325 = sphi 0, %s324
      %s341 = sphi 0, %s325
    $region4: #{tpu_custom_call.1} parent=1 // loop_header_branch
      %26 = sbr.rel (%p24) target = $region8
    $region5: #{tpu_custom_call.1} parent=1 // loop_body
      %s28 = ssub.s32 %s23, 1
      %s29 = ssub.s32 %s23, 2
      %s30 = sadd.s32 %s23, 1
      %s31 = ssub.s32 %s23, %s30
      %p32 = scmp.eq.s32.totalorder %s31, 0
      %s34 = sadd.s32 %s33, 1
      %s35 = scalar_select %p32, %s33, %s34
      %p38 = pneg %p32
      %p39 = scmp.eq.s32.totalorder %s23, 1
      %p40 = por %p38, %p39
      %p41 = scmp.ne.s32.totalorder %s33, %s36
      %p42 = scmp.eq.s32.totalorder %s23, 0
      %p43 = por %p41, %p42
      %p44 = scmp.ne.s32.totalorder %s33, %s36
      %p45 = scmp.eq.s32.totalorder %s28, 1
      %p46 = por %p44, %p45
      %p47 = scmp.ne.s32.totalorder %s36, %s37
      %p48 = scmp.eq.s32.totalorder %s28, 0
      %p49 = por %p47, %p48
      %p50 = scmp.ne.s32.totalorder %s36, %s37
      %p51 = scmp.eq.s32.totalorder %s29, 1
      %p52 = por %p50, %p51
      %p54 = scmp.ne.s32.totalorder %s37, %s53
      %p55 = scmp.eq.s32.totalorder %s29, 0
      %p56 = por %p54, %p55
      %s57 = ssub.s32 %s23, %s30
      %p58 = scmp.eq.s32.totalorder %s57, 0
      %s60 = sadd.s32 %s59, 1
      %s61 = scalar_select %p58, %s59, %s60
      %p64 = pneg %p58
      %p65 = scmp.eq.s32.totalorder %s23, 1
      %p66 = por %p64, %p65
      %p67 = scmp.ne.s32.totalorder %s59, %s62
      %p68 = scmp.eq.s32.totalorder %s23, 0
      %p69 = por %p67, %p68
      %p70 = scmp.ne.s32.totalorder %s59, %s62
      %p71 = scmp.eq.s32.totalorder %s28, 1
      %p72 = por %p70, %p71
      %p73 = scmp.ne.s32.totalorder %s62, %s63
      %p74 = scmp.eq.s32.totalorder %s28, 0
      %p75 = por %p73, %p74
      %p76 = scmp.ne.s32.totalorder %s62, %s63
      %p77 = scmp.eq.s32.totalorder %s29, 1
      %p78 = por %p76, %p77
      %p80 = scmp.ne.s32.totalorder %s63, %s79
      %p81 = scmp.eq.s32.totalorder %s29, 0
      %p82 = por %p80, %p81
      %s84 = sadd.s32 %s83, 1
      %p87 = scmp.eq.s32.totalorder %s23, 1
      %p88 = scmp.ne.s32.totalorder %s83, %s85
      %p89 = scmp.eq.s32.totalorder %s23, 0
      %p90 = por %p88, %p89
      %p91 = scmp.ne.s32.totalorder %s83, %s85
      %p92 = scmp.eq.s32.totalorder %s28, 1
      %p93 = por %p91, %p92
      %p94 = scmp.ne.s32.totalorder %s85, %s86
      %p95 = scmp.eq.s32.totalorder %s28, 0
      %p96 = por %p94, %p95
      %p97 = scmp.ne.s32.totalorder %s85, %s86
      %p98 = scmp.eq.s32.totalorder %s29, 1
      %p99 = por %p97, %p98
      %p101 = scmp.ne.s32.totalorder %s86, %s100
      %p102 = scmp.eq.s32.totalorder %s29, 0
      %p103 = por %p101, %p102
      %s105 = sadd.s32 %s104, 1
      %p108 = scmp.eq.s32.totalorder %s23, 1
      %p109 = scmp.ne.s32.totalorder %s104, %s106
      %p110 = scmp.eq.s32.totalorder %s23, 0
      %p111 = por %p109, %p110
      %p112 = scmp.ne.s32.totalorder %s104, %s106
      %p113 = scmp.eq.s32.totalorder %s28, 1
      %p114 = por %p112, %p113
      %p115 = scmp.ne.s32.totalorder %s106, %s107
      %p116 = scmp.eq.s32.totalorder %s28, 0
      %p117 = por %p115, %p116
      %p118 = scmp.ne.s32.totalorder %s106, %s107
      %p119 = scmp.eq.s32.totalorder %s29, 1
      %p120 = por %p118, %p119
      %p122 = scmp.ne.s32.totalorder %s107, %s121
      %p123 = scmp.eq.s32.totalorder %s29, 0
      %p124 = por %p122, %p123
      %s126 = sadd.s32 %s125, 1
      %p129 = scmp.eq.s32.totalorder %s23, 1
      %p130 = scmp.ne.s32.totalorder %s125, %s127
      %p131 = scmp.eq.s32.totalorder %s23, 0
      %p132 = por %p130, %p131
      %p133 = scmp.ne.s32.totalorder %s125, %s127
      %p134 = scmp.eq.s32.totalorder %s28, 1
      %p135 = por %p133, %p134
      %p136 = scmp.ne.s32.totalorder %s127, %s128
      %p137 = scmp.eq.s32.totalorder %s28, 0
      %p138 = por %p136, %p137
      %p139 = scmp.ne.s32.totalorder %s127, %s128
      %p140 = scmp.eq.s32.totalorder %s29, 1
      %p141 = por %p139, %p140
      %p143 = scmp.ne.s32.totalorder %s128, %s142
      %p144 = scmp.eq.s32.totalorder %s29, 0
      %p145 = por %p143, %p144
      %s147 = sadd.s32 %s146, 1
      %p150 = scmp.eq.s32.totalorder %s23, 1
      %p151 = scmp.ne.s32.totalorder %s146, %s148
      %p152 = scmp.eq.s32.totalorder %s23, 0
      %p153 = por %p151, %p152
      %p154 = scmp.ne.s32.totalorder %s146, %s148
      %p155 = scmp.eq.s32.totalorder %s28, 1
      %p156 = por %p154, %p155
      %p157 = scmp.ne.s32.totalorder %s148, %s149
      %p158 = scmp.eq.s32.totalorder %s28, 0
      %p159 = por %p157, %p158
      %p160 = scmp.ne.s32.totalorder %s148, %s149
      %p161 = scmp.eq.s32.totalorder %s29, 1
      %p162 = por %p160, %p161
      %p164 = scmp.ne.s32.totalorder %s149, %s163
      %p165 = scmp.eq.s32.totalorder %s29, 0
      %p166 = por %p164, %p165
      %s168 = sadd.s32 %s167, 1
      %p171 = scmp.eq.s32.totalorder %s23, 1
      %p172 = scmp.ne.s32.totalorder %s167, %s169
      %p173 = scmp.eq.s32.totalorder %s23, 0
      %p174 = por %p172, %p173
      %p175 = scmp.ne.s32.totalorder %s167, %s169
      %p176 = scmp.eq.s32.totalorder %s28, 1
      %p177 = por %p175, %p176
      %p178 = scmp.ne.s32.totalorder %s169, %s170
      %p179 = scmp.eq.s32.totalorder %s28, 0
      %p180 = por %p178, %p179
      %p181 = scmp.ne.s32.totalorder %s169, %s170
      %p182 = scmp.eq.s32.totalorder %s29, 1
      %p183 = por %p181, %p182
      %p185 = scmp.ne.s32.totalorder %s170, %s184
      %p186 = scmp.eq.s32.totalorder %s29, 0
      %p187 = por %p185, %p186
      %s189 = sadd.s32 %s188, 1
      %p192 = scmp.eq.s32.totalorder %s23, 1
      %p193 = scmp.ne.s32.totalorder %s188, %s190
      %p194 = scmp.eq.s32.totalorder %s23, 0
      %p195 = por %p193, %p194
      %p196 = scmp.ne.s32.totalorder %s188, %s190
      %p197 = scmp.eq.s32.totalorder %s28, 1
      %p198 = por %p196, %p197
      %p199 = scmp.ne.s32.totalorder %s190, %s191
      %p200 = scmp.eq.s32.totalorder %s28, 0
      %p201 = por %p199, %p200
      %p202 = scmp.ne.s32.totalorder %s190, %s191
      %p203 = scmp.eq.s32.totalorder %s29, 1
      %p204 = por %p202, %p203
      %p206 = scmp.ne.s32.totalorder %s191, %s205
      %p207 = scmp.eq.s32.totalorder %s29, 0
      %p208 = por %p206, %p207
      %s210 = sadd.s32 %s209, 1
      %p213 = scmp.eq.s32.totalorder %s23, 1
      %p214 = scmp.ne.s32.totalorder %s209, %s211
      %p215 = scmp.eq.s32.totalorder %s23, 0
      %p216 = por %p214, %p215
      %p217 = scmp.ne.s32.totalorder %s209, %s211
      %p218 = scmp.eq.s32.totalorder %s28, 1
      %p219 = por %p217, %p218
      %p220 = scmp.ne.s32.totalorder %s211, %s212
      %p221 = scmp.eq.s32.totalorder %s28, 0
      %p222 = por %p220, %p221
      %p223 = scmp.ne.s32.totalorder %s211, %s212
      %p224 = scmp.eq.s32.totalorder %s29, 1
      %p225 = por %p223, %p224
      %p227 = scmp.ne.s32.totalorder %s212, %s226
      %p228 = scmp.eq.s32.totalorder %s29, 0
      %p229 = por %p227, %p228
      %s231 = sadd.s32 %s230, 1
      %p234 = scmp.eq.s32.totalorder %s23, 1
      %p235 = scmp.ne.s32.totalorder %s230, %s232
      %p236 = scmp.eq.s32.totalorder %s23, 0
      %p237 = por %p235, %p236
      %p238 = scmp.ne.s32.totalorder %s230, %s232
      %p239 = scmp.eq.s32.totalorder %s28, 1
      %p240 = por %p238, %p239
      %p241 = scmp.ne.s32.totalorder %s232, %s233
      %p242 = scmp.eq.s32.totalorder %s28, 0
      %p243 = por %p241, %p242
      %p244 = scmp.ne.s32.totalorder %s232, %s233
      %p245 = scmp.eq.s32.totalorder %s29, 1
      %p246 = por %p244, %p245
      %p248 = scmp.ne.s32.totalorder %s233, %s247
      %p249 = scmp.eq.s32.totalorder %s29, 0
      %p250 = por %p248, %p249
      %s252 = sadd.s32 %s251, 1
      %p255 = scmp.eq.s32.totalorder %s23, 1
      %p256 = scmp.ne.s32.totalorder %s251, %s253
      %p257 = scmp.eq.s32.totalorder %s23, 0
      %p258 = por %p256, %p257
      %p259 = scmp.ne.s32.totalorder %s251, %s253
      %p260 = scmp.eq.s32.totalorder %s28, 1
      %p261 = por %p259, %p260
      %p262 = scmp.ne.s32.totalorder %s253, %s254
      %p263 = scmp.eq.s32.totalorder %s28, 0
      %p264 = por %p262, %p263
      %p265 = scmp.ne.s32.totalorder %s253, %s254
      %p266 = scmp.eq.s32.totalorder %s29, 1
      %p267 = por %p265, %p266
      %p269 = scmp.ne.s32.totalorder %s254, %s268
      %p270 = scmp.eq.s32.totalorder %s29, 0
      %p271 = por %p269, %p270
      %s273 = sadd.s32 %s272, 1
      %p276 = scmp.eq.s32.totalorder %s23, 1
      %p277 = scmp.ne.s32.totalorder %s272, %s274
      %p278 = scmp.eq.s32.totalorder %s23, 0
      %p279 = por %p277, %p278
      %p280 = scmp.ne.s32.totalorder %s272, %s274
      %p281 = scmp.eq.s32.totalorder %s28, 1
      %p282 = por %p280, %p281
      %p283 = scmp.ne.s32.totalorder %s274, %s275
      %p284 = scmp.eq.s32.totalorder %s28, 0
      %p285 = por %p283, %p284
      %p286 = scmp.ne.s32.totalorder %s274, %s275
      %p287 = scmp.eq.s32.totalorder %s29, 1
      %p288 = por %p286, %p287
      %p290 = scmp.ne.s32.totalorder %s275, %s289
      %p291 = scmp.eq.s32.totalorder %s29, 0
      %p292 = por %p290, %p291
      %s293 = ssub.s32 %s23, %s30
      %p294 = scmp.eq.s32.totalorder %s293, 0
      %s296 = sadd.s32 %s295, 1
      %s297 = scalar_select %p294, %s295, %s296
      %p300 = pneg %p294
      %p301 = scmp.eq.s32.totalorder %s23, 1
      %p302 = por %p300, %p301
      %p303 = scmp.ne.s32.totalorder %s295, %s298
      %p304 = scmp.eq.s32.totalorder %s23, 0
      %p305 = por %p303, %p304
      %p306 = scmp.ne.s32.totalorder %s295, %s298
      %p307 = scmp.eq.s32.totalorder %s28, 1
      %p308 = por %p306, %p307
      %p309 = scmp.ne.s32.totalorder %s298, %s299
      %p310 = scmp.eq.s32.totalorder %s28, 0
      %p311 = por %p309, %p310
      %p312 = scmp.ne.s32.totalorder %s298, %s299
      %p313 = scmp.eq.s32.totalorder %s29, 1
      %p314 = por %p312, %p313
      %p316 = scmp.ne.s32.totalorder %s299, %s315
      %p317 = scmp.eq.s32.totalorder %s29, 0
      %p318 = por %p316, %p317
      %s319 = ssub.s32 %s23, %s30
      %p320 = scmp.eq.s32.totalorder %s319, 0
      %s322 = sadd.s32 %s321, 1
      %s323 = scalar_select %p320, %s321, %s322
      %p326 = pneg %p320
      %p327 = scmp.eq.s32.totalorder %s23, 1
      %p328 = por %p326, %p327
      %p329 = scmp.ne.s32.totalorder %s321, %s324
      %p330 = scmp.eq.s32.totalorder %s23, 0
      %p331 = por %p329, %p330
      %p332 = scmp.ne.s32.totalorder %s321, %s324
      %p333 = scmp.eq.s32.totalorder %s28, 1
      %p334 = por %p332, %p333
      %p335 = scmp.ne.s32.totalorder %s324, %s325
      %p336 = scmp.eq.s32.totalorder %s28, 0
      %p337 = por %p335, %p336
      %p338 = scmp.ne.s32.totalorder %s324, %s325
      %p339 = scmp.eq.s32.totalorder %s29, 1
      %p340 = por %p338, %p339
      %p342 = scmp.ne.s32.totalorder %s325, %s341
      %p343 = scmp.eq.s32.totalorder %s29, 0
      %p344 = por %p342, %p343
      %p345 = scmp.le.s32.totalorder 1, %s23
      %p346 = scmp.lt.s32.totalorder %s23, 3
      %p347 = pnand %p345, %p346
      %p348 = pneg %p347
      // Predicated region
      $region9: #{tpu_custom_call.1} parent=5 // pred_check
        _
      $region10: #{tpu_custom_call.1} parent=5 // pred_check_branch
        %350 = sbr.rel (%p347) target = $region12
      $region11: #{tpu_custom_call.1} parent=5 // pred_region
        %s351 = ssub.s32 %s23, 1
        // Predicated region
        $region13: #{tpu_custom_call.1} parent=11 // pred_check
          %p352 = pneg %p96
        $region14: #{tpu_custom_call.1} parent=11 // pred_check_branch
          %354 = sbr.rel (%p352) target = $region16
        $region15: #{tpu_custom_call.1} parent=11 // pred_region
          _
        $region16: #{tpu_custom_call.1} parent=11 // pred_fallthru
          _
        // Predicated region
        $region17: #{tpu_custom_call.1} parent=11 // pred_check
          %p355 = pneg %p117
        $region18: #{tpu_custom_call.1} parent=11 // pred_check_branch
          %357 = sbr.rel (%p355) target = $region20
        $region19: #{tpu_custom_call.1} parent=11 // pred_region
          _
        $region20: #{tpu_custom_call.1} parent=11 // pred_fallthru
          _
        // Predicated region
        $region21: #{tpu_custom_call.1} parent=11 // pred_check
          %p358 = pneg %p138
        $region22: #{tpu_custom_call.1} parent=11 // pred_check_branch
          %360 = sbr.rel (%p358) target = $region24
        $region23: #{tpu_custom_call.1} parent=11 // pred_region
          _
        $region24: #{tpu_custom_call.1} parent=11 // pred_fallthru
          _
        // Predicated region
        $region25: #{tpu_custom_call.1} parent=11 // pred_check
          %p361 = pneg %p159
        $region26: #{tpu_custom_call.1} parent=11 // pred_check_branch
          %363 = sbr.rel (%p361) target = $region28
        $region27: #{tpu_custom_call.1} parent=11 // pred_region
          _
        $region28: #{tpu_custom_call.1} parent=11 // pred_fallthru
          _
        // Predicated region
        $region29: #{tpu_custom_call.1} parent=11 // pred_check
          %p364 = pneg %p180
        $region30: #{tpu_custom_call.1} parent=11 // pred_check_branch
          %366 = sbr.rel (%p364) target = $region32
        $region31: #{tpu_custom_call.1} parent=11 // pred_region
          _
        $region32: #{tpu_custom_call.1} parent=11 // pred_fallthru
          _
        // Predicated region
        $region33: #{tpu_custom_call.1} parent=11 // pred_check
          %p367 = pneg %p201
        $region34: #{tpu_custom_call.1} parent=11 // pred_check_branch
          %369 = sbr.rel (%p367) target = $region36
        $region35: #{tpu_custom_call.1} parent=11 // pred_region
          _
        $region36: #{tpu_custom_call.1} parent=11 // pred_fallthru
          _
        // Predicated region
        $region37: #{tpu_custom_call.1} parent=11 // pred_check
          %p370 = pneg %p222
        $region38: #{tpu_custom_call.1} parent=11 // pred_check_branch
          %372 = sbr.rel (%p370) target = $region40
        $region39: #{tpu_custom_call.1} parent=11 // pred_region
          _
        $region40: #{tpu_custom_call.1} parent=11 // pred_fallthru
          _
        // Predicated region
        $region41: #{tpu_custom_call.1} parent=11 // pred_check
          %p373 = pneg %p243
        $region42: #{tpu_custom_call.1} parent=11 // pred_check_branch
          %375 = sbr.rel (%p373) target = $region44
        $region43: #{tpu_custom_call.1} parent=11 // pred_region
          _
        $region44: #{tpu_custom_call.1} parent=11 // pred_fallthru
          _
        // Predicated region
        $region45: #{tpu_custom_call.1} parent=11 // pred_check
          %p376 = pneg %p264
        $region46: #{tpu_custom_call.1} parent=11 // pred_check_branch
          %378 = sbr.rel (%p376) target = $region48
        $region47: #{tpu_custom_call.1} parent=11 // pred_region
          _
        $region48: #{tpu_custom_call.1} parent=11 // pred_fallthru
          _
        // Predicated region
        $region49: #{tpu_custom_call.1} parent=11 // pred_check
          %p379 = pneg %p285
        $region50: #{tpu_custom_call.1} parent=11 // pred_check_branch
          %381 = sbr.rel (%p379) target = $region52
        $region51: #{tpu_custom_call.1} parent=11 // pred_region
          _
        $region52: #{tpu_custom_call.1} parent=11 // pred_fallthru
          _
      $region12: #{tpu_custom_call.1} parent=5 // pred_fallthru
        _
      %p382 = scmp.lt.s32.totalorder %s23, 2
      // Predicated region
      $region53: #{tpu_custom_call.1} parent=5 // pred_check
        %p383 = pneg %p382
      $region54: #{tpu_custom_call.1} parent=5 // pred_check_branch
        %385 = sbr.rel (%p383) target = $region56
      $region55: #{tpu_custom_call.1} parent=5 // pred_region
        // Predicated region
        $region57: #{tpu_custom_call.1} parent=55 // pred_check
          %p386 = pneg %p43
        $region58: #{tpu_custom_call.1} parent=55 // pred_check_branch
          %388 = sbr.rel (%p386) target = $region60
        $region59: #{tpu_custom_call.1} parent=55 // pred_region
          %p389 = scmp.lt.s32.totalorder %s23, 1
          %s390 = scalar_select %p389, %s23, 1
          %s391 = smul.addr %s390, 8
          %s392 = scalar_lea.vmem %s0, %s391
        $region60: #{tpu_custom_call.1} parent=55 // pred_fallthru
          _
        // Predicated region
        $region61: #{tpu_custom_call.1} parent=55 // pred_check
          %p393 = pneg %p69
        $region62: #{tpu_custom_call.1} parent=55 // pred_check_branch
          %395 = sbr.rel (%p393) target = $region64
        $region63: #{tpu_custom_call.1} parent=55 // pred_region
          %p396 = scmp.lt.s32.totalorder %s23, 1
          %s397 = scalar_select %p396, %s23, 1
          %s398 = smul.addr %s397, 8
          %s399 = scalar_lea.vmem %s1, %s398
        $region64: #{tpu_custom_call.1} parent=55 // pred_fallthru
          _
      $region56: #{tpu_custom_call.1} parent=5 // pred_fallthru
        _
      %p400 = scmp.le.s32.totalorder 1, %s23
      %p401 = scmp.lt.s32.totalorder %s23, 3
      %p402 = pnand %p400, %p401
      %p403 = pneg %p402
      // Predicated region
      $region65: #{tpu_custom_call.1} parent=5 // pred_check
        _
      $region66: #{tpu_custom_call.1} parent=5 // pred_check_branch
        %405 = sbr.rel (%p402) target = $region68
      $region67: #{tpu_custom_call.1} parent=5 // pred_region
        %s406 = ssub.s32 %s23, 1
        %p407 = scmp.lt.s32.totalorder %s28, 1
        %s408 = scalar_select %p407, %s28, 1
        %s409 = smul.addr %s408, 8
        %s410 = scalar_lea.vmem %s0, %s409
        %p411 = pneg %p49
        %p412 = pneg %p46
        %p413 = scmp.lt.s32.totalorder %s28, 1
        %s414 = scalar_select %p413, %s28, 1
        %s415 = smul.addr %s414, 8
        %s416 = scalar_lea.vmem %s1, %s415
        %p417 = pneg %p75
        %p418 = pneg %p72
        %p419 = pneg %p96
        %p420 = pneg %p93
        %p421 = pneg %p117
        %p422 = pneg %p114
        %p423 = pneg %p138
        %p424 = pneg %p135
        %p425 = pneg %p159
        %p426 = pneg %p156
        %p427 = pneg %p180
        %p428 = pneg %p177
        %p429 = pneg %p201
        %p430 = pneg %p198
        %p431 = pneg %p222
        %p432 = pneg %p219
        %p433 = pneg %p243
        %p434 = pneg %p240
        %p435 = pneg %p264
        %p436 = pneg %p261
        %p437 = pneg %p285
        %p438 = pneg %p282
        %p439 = pneg %p311
        %p440 = pneg %p308
        %s441 = sand.u32 %s298, 1
        %s442 = scalar_lea.sflag [#allocation3], %s441
        %s443 = sand.u32 %s298, 1
        %s444 = smul.addr %s443, 8
        %s445 = scalar_lea.vmem [#allocation2], %s444
        %p446 = pneg %p337
        %p447 = pneg %p334
        %p448 = scmp.lt.s32.totalorder %s28, 1
        %s449 = scalar_select %p448, %s28, 1
        %s450 = smul.addr %s449, 8
        %s451 = scalar_lea.vmem %s13, %s450
        %p452 = scmp.lt.s32.totalorder %s28, 1
        %s453 = scalar_select %p452, %s28, 1
        %s454 = smul.addr %s453, 8
        %s455 = scalar_lea.vmem %s0, %s454
        %p456 = scmp.lt.s32.totalorder %s28, 1
        %s457 = scalar_select %p456, %s28, 1
        %s458 = smul.addr %s457, 8
        %s459 = scalar_lea.vmem %s1, %s458
        %p460 = scmp.lt.s32.totalorder %s28, 1
        %s461 = scalar_select %p460, %s28, 1
        %s462 = smul.addr %s461, 8
        %s463 = scalar_lea.vmem %s13, %s462
        %v464 = vld [vmem:[%s455] sm:$0xff]
        %v465 = vld [vmem:[%s459] sm:$0x3f]
        %v466 = vld [vmem:[%s3] sm:$0xf]
        %vm467 = vcmask 31744
        %v469 = vsel %vm467, %v465, 0
        %vm471 = vcmask 1043456
        %v473 = vsel %vm471, %v466, 0
        %475 = vmatprep.subr.mxu0 0.0
        %476 = vmatpush1.msra.mxu0 %v473
        %477 = vmatprep.subr.mxu0 0.0
        %478 = vmatpush1.msra.mxu0 0.0
        %479 = vmatprep.subr.mxu0 0.0
        %480 = vmatpush1.msra.mxu0 0.0
        %481 = vmatprep.subr.mxu0 0.0
        %482 = vmatpush1.msra.mxu0 0.0
        %483 = vmatprep.subr.mxu0 0.0
        %484 = vmatpush1.msra.mxu0 0.0
        %485 = vmatprep.subr.mxu0 0.0
        %486 = vmatpush1.msra.mxu0 0.0
        %487 = vmatprep.subr.mxu0 0.0
        %488 = vmatpush1.msra.mxu0 0.0
        %489 = vmatprep.subr.mxu0 0.0
        %490 = vmatpush1.msra.mxu0 0.0
        %491 = vmatprep.subr.mxu0 0.0
        %492 = vmatpush1.msra.mxu0 0.0
        %493 = vmatprep.subr.mxu0 0.0
        %494 = vmatpush1.msra.mxu0 0.0
        %495 = vmatprep.subr.mxu0 0.0
        %496 = vmatpush1.msra.mxu0 0.0
        %497 = vmatprep.subr.mxu0 0.0
        %498 = vmatpush1.msra.mxu0 0.0
        %499 = vmatprep.subr.mxu0 0.0
        %500 = vmatpush1.msra.mxu0 0.0
        %501 = vmatprep.subr.mxu0 0.0
        %502 = vmatpush1.msra.mxu0 0.0
        %503 = vmatprep.subr.mxu0 0.0
        %504 = vmatpush1.msra.mxu0 0.0
        %505 = vmatprep.subr.mxu0 0.0
        %506 = vmatpush1.msra.mxu0 0.0
        %507 = vmatprep.subr.mxu0 0.0
        %508 = vmatpush1.msra.mxu0 0.0
        %509 = vmatprep.subr.mxu0 0.0
        %510 = vmatpush1.msra.mxu0 0.0
        %511 = vmatprep.subr.mxu0 0.0
        %512 = vmatpush1.msra.mxu0 0.0
        %513 = vmatprep.subr.mxu0 0.0
        %514 = vmatpush1.msra.mxu0 0.0
        %515 = vmatprep.subr.mxu0 0.0
        %516 = vmatpush1.msra.mxu0 0.0
        %517 = vmatprep.subr.mxu0 0.0
        %518 = vmatpush1.msra.mxu0 0.0
        %519 = vmatprep.subr.mxu0 0.0
        %520 = vmatpush1.msra.mxu0 0.0
        %521 = vmatprep.subr.mxu0 0.0
        %522 = vmatpush1.msra.mxu0 0.0
        %523 = vmatprep.subr.mxu0 0.0
        %524 = vmatpush1.msra.mxu0 0.0
        %525 = vmatprep.subr.mxu0 0.0
        %526 = vmatpush1.msra.mxu0 0.0
        %527 = vmatprep.subr.mxu0 0.0
        %528 = vmatpush1.msra.mxu0 0.0
        %529 = vmatprep.subr.mxu0 0.0
        %530 = vmatpush1.msra.mxu0 0.0
        %531 = vmatprep.subr.mxu0 0.0
        %532 = vmatpush1.msra.mxu0 0.0
        %533 = vmatprep.subr.mxu0 0.0
        %534 = vmatpush1.msra.mxu0 0.0
        %535 = vmatprep.subr.mxu0 0.0
        %536 = vmatpush1.msra.mxu0 0.0
        %537 = vmatprep.subr.mxu0 0.0
        %538 = vmatpush1.msra.mxu0 0.0
        %539 = vmatprep.mubr.f32.mxu0 0.0
        %540 = vmatmul.mubr.f32.gmra.mrb[0].mxu0 %v469
        %v541 = vpop.f32.mrb[0].mxu0
        %v542 = vadd.f32 0.0, %v541
        %v543 = vpop.f32.mrb[0].mxu0
        %544 = vdwg.mxu0
        %v545 = vld [vmem:[%s4] sm:$0xf]
        %v547 = vsel %vm471, %v545, 0
        %549 = vmatprep.subr.mxu0 0.0
        %550 = vmatpush1.msra.mxu0 %v547
        %551 = vmatprep.subr.mxu0 0.0
        %552 = vmatpush1.msra.mxu0 0.0
        %553 = vmatprep.subr.mxu0 0.0
        %554 = vmatpush1.msra.mxu0 0.0
        %555 = vmatprep.subr.mxu0 0.0
        %556 = vmatpush1.msra.mxu0 0.0
        %557 = vmatprep.subr.mxu0 0.0
        %558 = vmatpush1.msra.mxu0 0.0
        %559 = vmatprep.subr.mxu0 0.0
        %560 = vmatpush1.msra.mxu0 0.0
        %561 = vmatprep.subr.mxu0 0.0
        %562 = vmatpush1.msra.mxu0 0.0
        %563 = vmatprep.subr.mxu0 0.0
        %564 = vmatpush1.msra.mxu0 0.0
        %565 = vmatprep.subr.mxu0 0.0
        %566 = vmatpush1.msra.mxu0 0.0
        %567 = vmatprep.subr.mxu0 0.0
        %568 = vmatpush1.msra.mxu0 0.0
        %569 = vmatprep.subr.mxu0 0.0
        %570 = vmatpush1.msra.mxu0 0.0
        %571 = vmatprep.subr.mxu0 0.0
        %572 = vmatpush1.msra.mxu0 0.0
        %573 = vmatprep.subr.mxu0 0.0
        %574 = vmatpush1.msra.mxu0 0.0
        %575 = vmatprep.subr.mxu0 0.0
        %576 = vmatpush1.msra.mxu0 0.0
        %577 = vmatprep.subr.mxu0 0.0
        %578 = vmatpush1.msra.mxu0 0.0
        %579 = vmatprep.subr.mxu0 0.0
        %580 = vmatpush1.msra.mxu0 0.0
        %581 = vmatprep.subr.mxu0 0.0
        %582 = vmatpush1.msra.mxu0 0.0
        %583 = vmatprep.subr.mxu0 0.0
        %584 = vmatpush1.msra.mxu0 0.0
        %585 = vmatprep.subr.mxu0 0.0
        %586 = vmatpush1.msra.mxu0 0.0
        %587 = vmatprep.subr.mxu0 0.0
        %588 = vmatpush1.msra.mxu0 0.0
        %589 = vmatprep.subr.mxu0 0.0
        %590 = vmatpush1.msra.mxu0 0.0
        %591 = vmatprep.subr.mxu0 0.0
        %592 = vmatpush1.msra.mxu0 0.0
        %593 = vmatprep.subr.mxu0 0.0
        %594 = vmatpush1.msra.mxu0 0.0
        %595 = vmatprep.subr.mxu0 0.0
        %596 = vmatpush1.msra.mxu0 0.0
        %597 = vmatprep.subr.mxu0 0.0
        %598 = vmatpush1.msra.mxu0 0.0
        %599 = vmatprep.subr.mxu0 0.0
        %600 = vmatpush1.msra.mxu0 0.0
        %601 = vmatprep.subr.mxu0 0.0
        %602 = vmatpush1.msra.mxu0 0.0
        %603 = vmatprep.subr.mxu0 0.0
        %604 = vmatpush1.msra.mxu0 0.0
        %605 = vmatprep.subr.mxu0 0.0
        %606 = vmatpush1.msra.mxu0 0.0
        %607 = vmatprep.subr.mxu0 0.0
        %608 = vmatpush1.msra.mxu0 0.0
        %609 = vmatprep.subr.mxu0 0.0
        %610 = vmatpush1.msra.mxu0 0.0
        %611 = vmatprep.subr.mxu0 0.0
        %612 = vmatpush1.msra.mxu0 0.0
        %613 = vmatprep.mubr.f32.mxu0 0.0
        %614 = vmatmul.mubr.f32.gmra.mrb[0].mxu0 %v469
        %v615 = vpop.f32.mrb[0].mxu0
        %v616 = vadd.f32 0.0, %v615
        %v617 = vpop.f32.mrb[0].mxu0
        %618 = vdwg.mxu0
        %v619 = vld [vmem:[%s2] sm:$0x1f]
        %v620 = vld [vmem:[%s6] sm:$0xff]
        %vm621 = vcmask 48128
        %v623 = vsel %vm621, %v620, 0
        %vm625 = vcmask 1045504
        %v627 = vsel %vm625, %v542, 0
        %629 = vmatprep.subr.mxu0 0.0
        %630 = vmatpush1.msra.mxu0 %v627
        %631 = vmatprep.subr.mxu0 0.0
        %632 = vmatpush1.msra.mxu0 0.0
        %633 = vmatprep.subr.mxu0 0.0
        %634 = vmatpush1.msra.mxu0 0.0
        %635 = vmatprep.subr.mxu0 0.0
        %636 = vmatpush1.msra.mxu0 0.0
        %637 = vmatprep.subr.mxu0 0.0
        %638 = vmatpush1.msra.mxu0 0.0
        %639 = vmatprep.subr.mxu0 0.0
        %640 = vmatpush1.msra.mxu0 0.0
        %641 = vmatprep.subr.mxu0 0.0
        %642 = vmatpush1.msra.mxu0 0.0
        %643 = vmatprep.subr.mxu0 0.0
        %644 = vmatpush1.msra.mxu0 0.0
        %645 = vmatprep.subr.mxu0 0.0
        %646 = vmatpush1.msra.mxu0 0.0
        %647 = vmatprep.subr.mxu0 0.0
        %648 = vmatpush1.msra.mxu0 0.0
        %649 = vmatprep.subr.mxu0 0.0
        %650 = vmatpush1.msra.mxu0 0.0
        %651 = vmatprep.subr.mxu0 0.0
        %652 = vmatpush1.msra.mxu0 0.0
        %653 = vmatprep.subr.mxu0 0.0
        %654 = vmatpush1.msra.mxu0 0.0
        %655 = vmatprep.subr.mxu0 0.0
        %656 = vmatpush1.msra.mxu0 0.0
        %657 = vmatprep.subr.mxu0 0.0
        %658 = vmatpush1.msra.mxu0 0.0
        %659 = vmatprep.subr.mxu0 0.0
        %660 = vmatpush1.msra.mxu0 0.0
        %661 = vmatprep.subr.mxu0 0.0
        %662 = vmatpush1.msra.mxu0 0.0
        %663 = vmatprep.subr.mxu0 0.0
        %664 = vmatpush1.msra.mxu0 0.0
        %665 = vmatprep.subr.mxu0 0.0
        %666 = vmatpush1.msra.mxu0 0.0
        %667 = vmatprep.subr.mxu0 0.0
        %668 = vmatpush1.msra.mxu0 0.0
        %669 = vmatprep.subr.mxu0 0.0
        %670 = vmatpush1.msra.mxu0 0.0
        %671 = vmatprep.subr.mxu0 0.0
        %672 = vmatpush1.msra.mxu0 0.0
        %673 = vmatprep.subr.mxu0 0.0
        %674 = vmatpush1.msra.mxu0 0.0
        %675 = vmatprep.subr.mxu0 0.0
        %676 = vmatpush1.msra.mxu0 0.0
        %677 = vmatprep.subr.mxu0 0.0
        %678 = vmatpush1.msra.mxu0 0.0
        %679 = vmatprep.subr.mxu0 0.0
        %680 = vmatpush1.msra.mxu0 0.0
        %681 = vmatprep.subr.mxu0 0.0
        %682 = vmatpush1.msra.mxu0 0.0
        %683 = vmatprep.subr.mxu0 0.0
        %684 = vmatpush1.msra.mxu0 0.0
        %685 = vmatprep.subr.mxu0 0.0
        %686 = vmatpush1.msra.mxu0 0.0
        %687 = vmatprep.subr.mxu0 0.0
        %688 = vmatpush1.msra.mxu0 0.0
        %689 = vmatprep.subr.mxu0 0.0
        %690 = vmatpush1.msra.mxu0 0.0
        %691 = vmatprep.subr.mxu0 0.0
        %692 = vmatpush1.msra.mxu0 0.0
        %693 = vmatprep.mubr.f32.mxu0 0.0
        %694 = vmatmul.mubr.f32.gmra.mrb[0].mxu0 %v623
        %v695 = vpop.f32.mrb[0].mxu0
        %v696 = vadd.f32 0.0, %v695
        %v697 = vpop.f32.mrb[0].mxu0
        %698 = vdwg.mxu0
        %vm699 = vcmask 39936
        %v701 = vsel %vm699, %v464, 0
        %vm703 = vcmask 1044480
        %v705 = vsel %vm703, %v619, 0
        %707 = vmatprep.subr.mxu0 0.0
        %708 = vmatpush1.msra.mxu0 %v705
        %709 = vmatprep.subr.mxu0 0.0
        %710 = vmatpush1.msra.mxu0 0.0
        %711 = vmatprep.subr.mxu0 0.0
        %712 = vmatpush1.msra.mxu0 0.0
        %713 = vmatprep.subr.mxu0 0.0
        %714 = vmatpush1.msra.mxu0 0.0
        %715 = vmatprep.subr.mxu0 0.0
        %716 = vmatpush1.msra.mxu0 0.0
        %717 = vmatprep.subr.mxu0 0.0
        %718 = vmatpush1.msra.mxu0 0.0
        %719 = vmatprep.subr.mxu0 0.0
        %720 = vmatpush1.msra.mxu0 0.0
        %721 = vmatprep.subr.mxu0 0.0
        %722 = vmatpush1.msra.mxu0 0.0
        %723 = vmatprep.subr.mxu0 0.0
        %724 = vmatpush1.msra.mxu0 0.0
        %725 = vmatprep.subr.mxu0 0.0
        %726 = vmatpush1.msra.mxu0 0.0
        %727 = vmatprep.subr.mxu0 0.0
        %728 = vmatpush1.msra.mxu0 0.0
        %729 = vmatprep.subr.mxu0 0.0
        %730 = vmatpush1.msra.mxu0 0.0
        %731 = vmatprep.subr.mxu0 0.0
        %732 = vmatpush1.msra.mxu0 0.0
        %733 = vmatprep.subr.mxu0 0.0
        %734 = vmatpush1.msra.mxu0 0.0
        %735 = vmatprep.subr.mxu0 0.0
        %736 = vmatpush1.msra.mxu0 0.0
        %737 = vmatprep.subr.mxu0 0.0
        %738 = vmatpush1.msra.mxu0 0.0
        %739 = vmatprep.subr.mxu0 0.0
        %740 = vmatpush1.msra.mxu0 0.0
        %741 = vmatprep.subr.mxu0 0.0
        %742 = vmatpush1.msra.mxu0 0.0
        %743 = vmatprep.subr.mxu0 0.0
        %744 = vmatpush1.msra.mxu0 0.0
        %745 = vmatprep.subr.mxu0 0.0
        %746 = vmatpush1.msra.mxu0 0.0
        %747 = vmatprep.subr.mxu0 0.0
        %748 = vmatpush1.msra.mxu0 0.0
        %749 = vmatprep.subr.mxu0 0.0
        %750 = vmatpush1.msra.mxu0 0.0
        %751 = vmatprep.subr.mxu0 0.0
        %752 = vmatpush1.msra.mxu0 0.0
        %753 = vmatprep.subr.mxu0 0.0
        %754 = vmatpush1.msra.mxu0 0.0
        %755 = vmatprep.subr.mxu0 0.0
        %756 = vmatpush1.msra.mxu0 0.0
        %757 = vmatprep.subr.mxu0 0.0
        %758 = vmatpush1.msra.mxu0 0.0
        %759 = vmatprep.subr.mxu0 0.0
        %760 = vmatpush1.msra.mxu0 0.0
        %761 = vmatprep.subr.mxu0 0.0
        %762 = vmatpush1.msra.mxu0 0.0
        %763 = vmatprep.subr.mxu0 0.0
        %764 = vmatpush1.msra.mxu0 0.0
        %765 = vmatprep.subr.mxu0 0.0
        %766 = vmatpush1.msra.mxu0 0.0
        %767 = vmatprep.subr.mxu0 0.0
        %768 = vmatpush1.msra.mxu0 0.0
        %769 = vmatprep.subr.mxu0 0.0
        %770 = vmatpush1.msra.mxu0 0.0
        %771 = vmatprep.mubr.f32.mxu0 0.0
        %772 = vmatmul.mubr.f32.gmra.mrb[0].mxu0 %v701
        %v773 = vpop.f32.mrb[0].mxu0
        %v774 = vadd.f32 %v696, %v773
        %v775 = vpop.f32.mrb[0].mxu0
        %776 = vdwg.mxu0
        %v777 = vld [vmem:[%s7] sm:$0xff]
        %v779 = vsel %vm621, %v777, 0
        %v782 = vsel %vm625, %v616, 0
        %784 = vmatprep.subr.mxu0 0.0
        %785 = vmatpush1.msra.mxu0 %v782
        %786 = vmatprep.subr.mxu0 0.0
        %787 = vmatpush1.msra.mxu0 0.0
        %788 = vmatprep.subr.mxu0 0.0
        %789 = vmatpush1.msra.mxu0 0.0
        %790 = vmatprep.subr.mxu0 0.0
        %791 = vmatpush1.msra.mxu0 0.0
        %792 = vmatprep.subr.mxu0 0.0
        %793 = vmatpush1.msra.mxu0 0.0
        %794 = vmatprep.subr.mxu0 0.0
        %795 = vmatpush1.msra.mxu0 0.0
        %796 = vmatprep.subr.mxu0 0.0
        %797 = vmatpush1.msra.mxu0 0.0
        %798 = vmatprep.subr.mxu0 0.0
        %799 = vmatpush1.msra.mxu0 0.0
        %800 = vmatprep.subr.mxu0 0.0
        %801 = vmatpush1.msra.mxu0 0.0
        %802 = vmatprep.subr.mxu0 0.0
        %803 = vmatpush1.msra.mxu0 0.0
        %804 = vmatprep.subr.mxu0 0.0
        %805 = vmatpush1.msra.mxu0 0.0
        %806 = vmatprep.subr.mxu0 0.0
        %807 = vmatpush1.msra.mxu0 0.0
        %808 = vmatprep.subr.mxu0 0.0
        %809 = vmatpush1.msra.mxu0 0.0
        %810 = vmatprep.subr.mxu0 0.0
        %811 = vmatpush1.msra.mxu0 0.0
        %812 = vmatprep.subr.mxu0 0.0
        %813 = vmatpush1.msra.mxu0 0.0
        %814 = vmatprep.subr.mxu0 0.0
        %815 = vmatpush1.msra.mxu0 0.0
        %816 = vmatprep.subr.mxu0 0.0
        %817 = vmatpush1.msra.mxu0 0.0
        %818 = vmatprep.subr.mxu0 0.0
        %819 = vmatpush1.msra.mxu0 0.0
        %820 = vmatprep.subr.mxu0 0.0
        %821 = vmatpush1.msra.mxu0 0.0
        %822 = vmatprep.subr.mxu0 0.0
        %823 = vmatpush1.msra.mxu0 0.0
        %824 = vmatprep.subr.mxu0 0.0
        %825 = vmatpush1.msra.mxu0 0.0
        %826 = vmatprep.subr.mxu0 0.0
        %827 = vmatpush1.msra.mxu0 0.0
        %828 = vmatprep.subr.mxu0 0.0
        %829 = vmatpush1.msra.mxu0 0.0
        %830 = vmatprep.subr.mxu0 0.0
        %831 = vmatpush1.msra.mxu0 0.0
        %832 = vmatprep.subr.mxu0 0.0
        %833 = vmatpush1.msra.mxu0 0.0
        %834 = vmatprep.subr.mxu0 0.0
        %835 = vmatpush1.msra.mxu0 0.0
        %836 = vmatprep.subr.mxu0 0.0
        %837 = vmatpush1.msra.mxu0 0.0
        %838 = vmatprep.subr.mxu0 0.0
        %839 = vmatpush1.msra.mxu0 0.0
        %840 = vmatprep.subr.mxu0 0.0
        %841 = vmatpush1.msra.mxu0 0.0
        %842 = vmatprep.subr.mxu0 0.0
        %843 = vmatpush1.msra.mxu0 0.0
        %844 = vmatprep.subr.mxu0 0.0
        %845 = vmatpush1.msra.mxu0 0.0
        %846 = vmatprep.subr.mxu0 0.0
        %847 = vmatpush1.msra.mxu0 0.0
        %848 = vmatprep.mubr.f32.mxu0 0.0
        %849 = vmatmul.mubr.f32.gmra.mrb[0].mxu0 %v779
        %v850 = vpop.f32.mrb[0].mxu0
        %v851 = vadd.f32 0.0, %v850
        %v852 = vpop.f32.mrb[0].mxu0
        %853 = vdwg.mxu0
        %v854 = vadd.f32 %v774, %v851
        %v855 = vld [vmem:[%s5] sm:$0x1]
        %v857 = vlaneseq
        %v858 = vshrl.u32 %v857, 7
        %v859 = vsub.s32 0, %v858
        %v860 = vrot.slane %v855, %v859
        %v862 = vadd.f32 %v854, %v860
        %v863 = vmax.f32 %v862, 0.0
        %vm864 = vcmask 64512
        %865 = vst.msk [vmem:[%s445] sm:$0xff] %vm864, %v863
        %v866 = vld [vmem:[%s8] sm:$0x3f]
        %v868 = vsel %vm864, %v866, 0
        %870 = vmatprep.subr.mxu0 0.0
        %871 = vmatpush1.msra.mxu0 %v863
        %872 = vmatprep.subr.mxu0 0.0
        %873 = vmatpush1.msra.mxu0 0.0
        %874 = vmatprep.subr.mxu0 0.0
        %875 = vmatpush1.msra.mxu0 0.0
        %876 = vmatprep.subr.mxu0 0.0
        %877 = vmatpush1.msra.mxu0 0.0
        %878 = vmatprep.subr.mxu0 0.0
        %879 = vmatpush1.msra.mxu0 0.0
        %880 = vmatprep.subr.mxu0 0.0
        %881 = vmatpush1.msra.mxu0 0.0
        %882 = vmatprep.subr.mxu0 0.0
        %883 = vmatpush1.msra.mxu0 0.0
        %884 = vmatprep.subr.mxu0 0.0
        %885 = vmatpush1.msra.mxu0 0.0
        %886 = vmatprep.subr.mxu0 0.0
        %887 = vmatpush1.msra.mxu0 0.0
        %888 = vmatprep.subr.mxu0 0.0
        %889 = vmatpush1.msra.mxu0 0.0
        %890 = vmatprep.subr.mxu0 0.0
        %891 = vmatpush1.msra.mxu0 0.0
        %892 = vmatprep.subr.mxu0 0.0
        %893 = vmatpush1.msra.mxu0 0.0
        %894 = vmatprep.subr.mxu0 0.0
        %895 = vmatpush1.msra.mxu0 0.0
        %896 = vmatprep.subr.mxu0 0.0
        %897 = vmatpush1.msra.mxu0 0.0
        %898 = vmatprep.subr.mxu0 0.0
        %899 = vmatpush1.msra.mxu0 0.0
        %900 = vmatprep.subr.mxu0 0.0
        %901 = vmatpush1.msra.mxu0 0.0
        %902 = vmatprep.subr.mxu0 0.0
        %903 = vmatpush1.msra.mxu0 0.0
        %904 = vmatprep.subr.mxu0 0.0
        %905 = vmatpush1.msra.mxu0 0.0
        %906 = vmatprep.subr.mxu0 0.0
        %907 = vmatpush1.msra.mxu0 0.0
        %908 = vmatprep.subr.mxu0 0.0
        %909 = vmatpush1.msra.mxu0 0.0
        %910 = vmatprep.subr.mxu0 0.0
        %911 = vmatpush1.msra.mxu0 0.0
        %912 = vmatprep.subr.mxu0 0.0
        %913 = vmatpush1.msra.mxu0 0.0
        %914 = vmatprep.subr.mxu0 0.0
        %915 = vmatpush1.msra.mxu0 0.0
        %916 = vmatprep.subr.mxu0 0.0
        %917 = vmatpush1.msra.mxu0 0.0
        %918 = vmatprep.subr.mxu0 0.0
        %919 = vmatpush1.msra.mxu0 0.0
        %920 = vmatprep.subr.mxu0 0.0
        %921 = vmatpush1.msra.mxu0 0.0
        %922 = vmatprep.subr.mxu0 0.0
        %923 = vmatpush1.msra.mxu0 0.0
        %924 = vmatprep.subr.mxu0 0.0
        %925 = vmatpush1.msra.mxu0 0.0
        %926 = vmatprep.subr.mxu0 0.0
        %927 = vmatpush1.msra.mxu0 0.0
        %928 = vmatprep.subr.mxu0 0.0
        %929 = vmatpush1.msra.mxu0 0.0
        %930 = vmatprep.subr.mxu0 0.0
        %931 = vmatpush1.msra.mxu0 0.0
        %932 = vmatprep.subr.mxu0 0.0
        %933 = vmatpush1.msra.mxu0 0.0
        %934 = vmatprep.mubr.f32.mxu0 0.0
        %935 = vmatmul.mubr.f32.gmra.mrb[0].mxu0 %v868
        %v936 = vpop.f32.mrb[0].mxu0
        %v937 = vadd.f32 0.0, %v936
        %v938 = vpop.f32.mrb[0].mxu0
        %939 = vdwg.mxu0
        %v940 = vld [vmem:[%s9] sm:$0xf]
        %v941 = vld [vmem:[%s10] sm:$0xff]
        %v943 = vsel %vm864, %v937, 0
        %945 = vmatprep.subr.mxu0 0.0
        %946 = vmatpush1.msra.mxu0 %v941
        %947 = vmatprep.subr.mxu0 0.0
        %948 = vmatpush1.msra.mxu0 0.0
        %949 = vmatprep.subr.mxu0 0.0
        %950 = vmatpush1.msra.mxu0 0.0
        %951 = vmatprep.subr.mxu0 0.0
        %952 = vmatpush1.msra.mxu0 0.0
        %953 = vmatprep.subr.mxu0 0.0
        %954 = vmatpush1.msra.mxu0 0.0
        %955 = vmatprep.subr.mxu0 0.0
        %956 = vmatpush1.msra.mxu0 0.0
        %957 = vmatprep.subr.mxu0 0.0
        %958 = vmatpush1.msra.mxu0 0.0
        %959 = vmatprep.subr.mxu0 0.0
        %960 = vmatpush1.msra.mxu0 0.0
        %961 = vmatprep.subr.mxu0 0.0
        %962 = vmatpush1.msra.mxu0 0.0
        %963 = vmatprep.subr.mxu0 0.0
        %964 = vmatpush1.msra.mxu0 0.0
        %965 = vmatprep.subr.mxu0 0.0
        %966 = vmatpush1.msra.mxu0 0.0
        %967 = vmatprep.subr.mxu0 0.0
        %968 = vmatpush1.msra.mxu0 0.0
        %969 = vmatprep.subr.mxu0 0.0
        %970 = vmatpush1.msra.mxu0 0.0
        %971 = vmatprep.subr.mxu0 0.0
        %972 = vmatpush1.msra.mxu0 0.0
        %973 = vmatprep.subr.mxu0 0.0
        %974 = vmatpush1.msra.mxu0 0.0
        %975 = vmatprep.subr.mxu0 0.0
        %976 = vmatpush1.msra.mxu0 0.0
        %977 = vmatprep.subr.mxu0 0.0
        %978 = vmatpush1.msra.mxu0 0.0
        %979 = vmatprep.subr.mxu0 0.0
        %980 = vmatpush1.msra.mxu0 0.0
        %981 = vmatprep.subr.mxu0 0.0
        %982 = vmatpush1.msra.mxu0 0.0
        %983 = vmatprep.subr.mxu0 0.0
        %984 = vmatpush1.msra.mxu0 0.0
        %985 = vmatprep.subr.mxu0 0.0
        %986 = vmatpush1.msra.mxu0 0.0
        %987 = vmatprep.subr.mxu0 0.0
        %988 = vmatpush1.msra.mxu0 0.0
        %989 = vmatprep.subr.mxu0 0.0
        %990 = vmatpush1.msra.mxu0 0.0
        %991 = vmatprep.subr.mxu0 0.0
        %992 = vmatpush1.msra.mxu0 0.0
        %993 = vmatprep.subr.mxu0 0.0
        %994 = vmatpush1.msra.mxu0 0.0
        %995 = vmatprep.subr.mxu0 0.0
        %996 = vmatpush1.msra.mxu0 0.0
        %997 = vmatprep.subr.mxu0 0.0
        %998 = vmatpush1.msra.mxu0 0.0
        %999 = vmatprep.subr.mxu0 0.0
        %1000 = vmatpush1.msra.mxu0 0.0
        %1001 = vmatprep.subr.mxu0 0.0
        %1002 = vmatpush1.msra.mxu0 0.0
        %1003 = vmatprep.subr.mxu0 0.0
        %1004 = vmatpush1.msra.mxu0 0.0
        %1005 = vmatprep.subr.mxu0 0.0
        %1006 = vmatpush1.msra.mxu0 0.0
        %1007 = vmatprep.subr.mxu0 0.0
        %1008 = vmatpush1.msra.mxu0 0.0
        %1009 = vmatprep.mubr.f32.mxu0 0.0
        %1010 = vmatmul.mubr.f32.gmra.mrb[0].mxu0 %v943
        %v1011 = vpop.f32.mrb[0].mxu0
        %v1012 = vadd.f32 0.0, %v1011
        %v1013 = vpop.f32.mrb[0].mxu0
        %1014 = vdwg.mxu0
        %v1016 = vsel %vm471, %v940, 0
        %1018 = vmatprep.subr.mxu0 0.0
        %1019 = vmatpush1.msra.mxu0 %v1016
        %1020 = vmatprep.subr.mxu0 0.0
        %1021 = vmatpush1.msra.mxu0 0.0
        %1022 = vmatprep.subr.mxu0 0.0
        %1023 = vmatpush1.msra.mxu0 0.0
        %1024 = vmatprep.subr.mxu0 0.0
        %1025 = vmatpush1.msra.mxu0 0.0
        %1026 = vmatprep.subr.mxu0 0.0
        %1027 = vmatpush1.msra.mxu0 0.0
        %1028 = vmatprep.subr.mxu0 0.0
        %1029 = vmatpush1.msra.mxu0 0.0
        %1030 = vmatprep.subr.mxu0 0.0
        %1031 = vmatpush1.msra.mxu0 0.0
        %1032 = vmatprep.subr.mxu0 0.0
        %1033 = vmatpush1.msra.mxu0 0.0
        %1034 = vmatprep.subr.mxu0 0.0
        %1035 = vmatpush1.msra.mxu0 0.0
        %1036 = vmatprep.subr.mxu0 0.0
        %1037 = vmatpush1.msra.mxu0 0.0
        %1038 = vmatprep.subr.mxu0 0.0
        %1039 = vmatpush1.msra.mxu0 0.0
        %1040 = vmatprep.subr.mxu0 0.0
        %1041 = vmatpush1.msra.mxu0 0.0
        %1042 = vmatprep.subr.mxu0 0.0
        %1043 = vmatpush1.msra.mxu0 0.0
        %1044 = vmatprep.subr.mxu0 0.0
        %1045 = vmatpush1.msra.mxu0 0.0
        %1046 = vmatprep.subr.mxu0 0.0
        %1047 = vmatpush1.msra.mxu0 0.0
        %1048 = vmatprep.subr.mxu0 0.0
        %1049 = vmatpush1.msra.mxu0 0.0
        %1050 = vmatprep.subr.mxu0 0.0
        %1051 = vmatpush1.msra.mxu0 0.0
        %1052 = vmatprep.subr.mxu0 0.0
        %1053 = vmatpush1.msra.mxu0 0.0
        %1054 = vmatprep.subr.mxu0 0.0
        %1055 = vmatpush1.msra.mxu0 0.0
        %1056 = vmatprep.subr.mxu0 0.0
        %1057 = vmatpush1.msra.mxu0 0.0
        %1058 = vmatprep.subr.mxu0 0.0
        %1059 = vmatpush1.msra.mxu0 0.0
        %1060 = vmatprep.subr.mxu0 0.0
        %1061 = vmatpush1.msra.mxu0 0.0
        %1062 = vmatprep.subr.mxu0 0.0
        %1063 = vmatpush1.msra.mxu0 0.0
        %1064 = vmatprep.subr.mxu0 0.0
        %1065 = vmatpush1.msra.mxu0 0.0
        %1066 = vmatprep.subr.mxu0 0.0
        %1067 = vmatpush1.msra.mxu0 0.0
        %1068 = vmatprep.subr.mxu0 0.0
        %1069 = vmatpush1.msra.mxu0 0.0
        %1070 = vmatprep.subr.mxu0 0.0
        %1071 = vmatpush1.msra.mxu0 0.0
        %1072 = vmatprep.subr.mxu0 0.0
        %1073 = vmatpush1.msra.mxu0 0.0
        %1074 = vmatprep.subr.mxu0 0.0
        %1075 = vmatpush1.msra.mxu0 0.0
        %1076 = vmatprep.subr.mxu0 0.0
        %1077 = vmatpush1.msra.mxu0 0.0
        %1078 = vmatprep.subr.mxu0 0.0
        %1079 = vmatpush1.msra.mxu0 0.0
        %1080 = vmatprep.subr.mxu0 0.0
        %1081 = vmatpush1.msra.mxu0 0.0
        %1082 = vmatprep.mubr.f32.mxu0 0.0
        %1083 = vmatmul.mubr.f32.gmra.mrb[0].mxu0 %v469
        %v1084 = vpop.f32.mrb[0].mxu0
        %v1085 = vadd.f32 %v1012, %v1084
        %v1086 = vpop.f32.mrb[0].mxu0
        %1087 = vdwg.mxu0
        %v1088 = vld [vmem:[%s11] sm:$0x1]
        %v1090 = vlaneseq
        %v1091 = vshrl.u32 %v1090, 7
        %v1092 = vsub.s32 0, %v1091
        %v1093 = vrot.slane %v1088, %v1092
        %v1095 = vadd.f32 %v1085, %v1093
        %v1096 = vmax.f32 %v1095, 0.0
        %vm1097 = vcmask 62464
        %1098 = vst.msk [vmem:[%s463] sm:$0x3f] %vm1097, %v1096
        %s1099 = sand.u32 %s298, 1
        %s1100 = scalar_lea.sflag [#allocation3], %s1099
        %s1101 = sand.u32 %s298, 1
        %s1102 = smul.addr %s1101, 8
        %s1103 = scalar_lea.vmem [#allocation2], %s1102
        %p1104 = scmp.lt.s32.totalorder %s28, 1
        %s1105 = scalar_select %p1104, %s28, 1
        %s1106 = smul.addr %s1105, 8
        %s1107 = scalar_lea.vmem %s13, %s1106
        // Predicated region
        $region69: #{tpu_custom_call.1} parent=67 // pred_check
          %p1108 = pneg %p308
        $region70: #{tpu_custom_call.1} parent=67 // pred_check_branch
          %1110 = sbr.rel (%p1108) target = $region72
        $region71: #{tpu_custom_call.1} parent=67 // pred_region
          %s1112 = ssub.s32 128, 128
          %1113 = vsyncadd %s1100, %s1112
          %s1114 = smul.addr %s28, 128
          %s1115 = scalar_lea.hbm %s12, %s1114
          %s1117 = sshll.u32 %s1103, 4
          %s1118 = int_to_ptr.vmem [resolvable:$true] %s1117
          %1120 = dma.vmem_to_hbm [thread:$0]  %s1118, 128, %s1115, %s1100
        $region72: #{tpu_custom_call.1} parent=67 // pred_fallthru
          _
        // Predicated region
        $region73: #{tpu_custom_call.1} parent=67 // pred_check
          %p1121 = pneg %p334
        $region74: #{tpu_custom_call.1} parent=67 // pred_check_branch
          %1123 = sbr.rel (%p1121) target = $region76
        $region75: #{tpu_custom_call.1} parent=67 // pred_region
          _
        $region76: #{tpu_custom_call.1} parent=67 // pred_fallthru
          _
      $region68: #{tpu_custom_call.1} parent=5 // pred_fallthru
        _
      %p1124 = scmp.le.s32.totalorder 2, %s23
      // Predicated region
      $region77: #{tpu_custom_call.1} parent=5 // pred_check
        %p1125 = pneg %p1124
      $region78: #{tpu_custom_call.1} parent=5 // pred_check_branch
        %1127 = sbr.rel (%p1125) target = $region80
      $region79: #{tpu_custom_call.1} parent=5 // pred_region
        %s1128 = ssub.s32 %s23, 2
        // Predicated region
        $region81: #{tpu_custom_call.1} parent=79 // pred_check
          %p1129 = pneg %p314
        $region82: #{tpu_custom_call.1} parent=79 // pred_check_branch
          %1131 = sbr.rel (%p1129) target = $region84
        $region83: #{tpu_custom_call.1} parent=79 // pred_region
          %s1132 = sand.u32 %s299, 1
          %s1133 = scalar_lea.sflag [#allocation3], %s1132
          %s1134 = sand.u32 %s299, 1
          %s1135 = smul.addr %s1134, 8
          %s1136 = scalar_lea.vmem [#allocation2], %s1135
          %1137 = dma.done %s1133, 128
        $region84: #{tpu_custom_call.1} parent=79 // pred_fallthru
          _
        // Predicated region
        $region85: #{tpu_custom_call.1} parent=79 // pred_check
          %p1138 = pneg %p340
        $region86: #{tpu_custom_call.1} parent=79 // pred_check_branch
          %1140 = sbr.rel (%p1138) target = $region88
        $region87: #{tpu_custom_call.1} parent=79 // pred_region
          %p1141 = scmp.lt.s32.totalorder %s29, 1
          %s1142 = scalar_select %p1141, %s29, 1
          %s1143 = smul.addr %s1142, 8
          %s1144 = scalar_lea.vmem %s13, %s1143
        $region88: #{tpu_custom_call.1} parent=79 // pred_fallthru
          _
      $region80: #{tpu_custom_call.1} parent=5 // pred_fallthru
        _
    $region6: #{tpu_custom_call.1} parent=1 // loop_footer
      %s27 = sadd.s32 1, %s23
    $region7: #{tpu_custom_call.1} parent=1 // loop_footer_branch
      %22 = sbr.rel target = $region3
    $region8: #{tpu_custom_call.1} parent=1 // loop_exit
      _
    %1145 = vsyncpa [#allocation3], 1
    %s1146 = scalar_lea.sflag [#allocation3], 1
    %1147 = vsyncpa %s1146, 1

</llo_original>
